<compile_context>
chip_gen: v5e
topology: v5e:2x2
jax: 0.10.0
libtpu: 0.0.40
codegen_flags: <defaults>
</compile_context>

<pallas_src>
import jax
import jax.numpy as jnp
from jax import lax
from jax.experimental import pallas as pl
from jax.experimental.pallas import tpu as pltpu


def resnorm_kernel(x_ref, lamb_ref, eps_ref, o_ref):
    # x_ref block: (TR, CW); lamb_ref: (1, CW) f32; eps_ref: SMEM (1, 1) f32.
    cw = x_ref.shape[1]
    eps = eps_ref[0, 0]

    # Pass 1: per-row mean (f32 accumulation; no long-lived f32 copy of x).
    mean = jnp.sum(x_ref[...], axis=1, keepdims=True, dtype=jnp.float32) * (1.0 / cw)

    # Pass 2: centered values; unbiased variance (torch.var default, correction=1).
    diff = x_ref[...].astype(jnp.float32) - mean
    var = jnp.sum(diff * diff, axis=1, keepdims=True) * (1.0 / max(cw - 1, 1))

    rinv = lax.rsqrt(var + eps)                 # (TR, 1), EUP
    lamb = lamb_ref[...]                        # (1, CW), f32

    # lamb * x + diff * rinv  ==  diff * (lamb + rinv) + lamb * mean
    o_ref[...] = (diff * (lamb + rinv) + lamb * mean).astype(o_ref.dtype)


def _pick_rows(num_rows, row_width, itemsize, target_block_bytes, min_grid_steps):
    """Row-block size: sublane-aligned, lane-padding aware, keeps >= min_grid_steps."""
    lanes = ((row_width + 127) // 128) * 128          # real VMEM lanes per row
    by_budget = target_block_bytes // (lanes * itemsize)
    by_depth = -(-num_rows // min_grid_steps)         # ceil: keep the pipeline deep
    rows = max(8, (min(by_budget, by_depth) // 8) * 8)
    return num_rows if rows >= num_rows else rows


def resnorm(x, eps_param, lamb_param, *, target_block_bytes=1 << 20, min_grid_steps=4):
    """x: (N, C, H, W); eps_param, lamb_param: (1, C, 1, 1) (uniform eps, per-channel lamb)."""
    N, C, H, W = x.shape
    R, CW = N * H, C * W

    # Lane-dense view: stats over (C, W) become a per-row reduce over the lane axis.
    x2 = jnp.transpose(x, (0, 2, 1, 3)).reshape(R, CW)

    # Per-channel lambda expanded to a lane-dense (1, C*W) row (channel-major, matching x2).
    lamb_row = jnp.broadcast_to(
        jnp.reshape(lamb_param, (C, 1)).astype(jnp.float32), (C, W)
    ).reshape(1, CW)

    # The module constructs eps with torch.full -> uniform across channels, so a
    # single SMEM scalar is exact.
    # TODO(synk): a genuinely per-channel eps would need the broadcast rsqrt path.
    eps_scalar = jnp.reshape(eps_param, (-1,))[:1].reshape(1, 1).astype(jnp.float32)

    tr = _pick_rows(R, CW, x.dtype.itemsize, target_block_bytes, min_grid_steps)
    grid = (pl.cdiv(R, tr),)

    out2 = pl.pallas_call(
        resnorm_kernel,
        out_shape=jax.ShapeDtypeStruct((R, CW), x.dtype),
        grid_spec=pltpu.PrefetchScalarGridSpec(
            num_scalar_prefetch=0,
            grid=grid,
            in_specs=[
                pl.BlockSpec((tr, CW), lambda r: (r, 0)),
                pl.BlockSpec((1, CW), lambda r: (0, 0)),
                pl.BlockSpec(memory_space=pltpu.MemorySpace.SMEM),
            ],
            out_specs=pl.BlockSpec((tr, CW), lambda r: (r, 0)),
        ),
        compiler_params=pltpu.CompilerParams(
            dimension_semantics=("parallel",),
        ),
    )(x2, lamb_row, eps_scalar)

    return jnp.transpose(out2.reshape(N, H, C, W), (0, 2, 1, 3))


if __name__ == "__main__":
    key = jax.random.PRNGKey(0)
    N, C, H, W = 2, 4, 16, 16

    x = jax.random.normal(key, (N, C, H, W), dtype=jnp.float32)

    # Deterministic params matching ResNorm.__init__(channels=C, lamb=0.1, eps=1e-5)
    eps_val, lamb_val = 1e-5, 0.1
    eps_param = jnp.full((1, C, 1, 1), eps_val, dtype=jnp.float32)
    lamb_param = jnp.full((1, C, 1, 1), lamb_val, dtype=jnp.float32)

    out = jax.block_until_ready(resnorm(x, eps_param, lamb_param))

    # Pure-JAX reference (unbiased variance, matching torch.var default).
    mean = jnp.mean(x, axis=(1, 3), keepdims=True)
    var = jnp.sum((x - mean) ** 2, axis=(1, 3), keepdims=True) / (C * W - 1)
    ref = lamb_param * x + (x - mean) / jnp.sqrt(var + eps_param)

    assert out.shape == x.shape and out.dtype == x.dtype
    assert jnp.allclose(out, ref, rtol=1e-4, atol=1e-4), "mismatch vs reference"

    print("KERNEL_OK")
</pallas_src>

<mosaic_0001>
module attributes {stable_mosaic.version = 11 : i64} {
  func.func @resnorm_kernel(%arg0: i32, %arg1: memref<8x64xf32, #tpu.memory_space<vmem>>, %arg2: memref<1x64xf32, #tpu.memory_space<vmem>>, %arg3: memref<1x1xf32, #tpu.memory_space<smem>>, %arg4: memref<8x64xf32, #tpu.memory_space<vmem>>) attributes {dimension_semantics = [#tpu.dimension_semantics<parallel>], iteration_bounds = array<i64: 4>, scalar_prefetch = 0 : i64, scratch_operands = 0 : i64, tpu.core_type = #tpu.core_type<tc>, window_params = [{transform_indices = @transform_0, window_bounds = array<i64: 8, 64>}, {pipeline_mode = #tpu.pipeline_mode<synchronous>, transform_indices = @transform_1, window_bounds = array<i64: 1, 64>}, {transform_indices = @transform_2, window_bounds = array<i64: 1, 1>}, {transform_indices = @transform_3, window_bounds = array<i64: 8, 64>}]} {
    %c0 = arith.constant 0 : index
    %c0_0 = arith.constant 0 : index
    %0 = memref.load %arg3[%c0, %c0_0] : memref<1x1xf32, #tpu.memory_space<smem>>
    %c0_1 = arith.constant 0 : index
    %c0_2 = arith.constant 0 : index
    %1 = vector.load %arg1[%c0_1, %c0_2] : memref<8x64xf32, #tpu.memory_space<vmem>>, vector<8x64xf32>
    %cst = arith.constant dense<0.000000e+00> : vector<8xf32>
    %2 = vector.multi_reduction <add>, %1, %cst [1] : vector<8x64xf32> to vector<8xf32>
    %3 = vector.shape_cast %2 : vector<8xf32> to vector<8x1xf32>
    %cst_3 = arith.constant 1.562500e-02 : f32
    %4 = vector.broadcast %cst_3 : f32 to vector<8x1xf32>
    %5 = arith.mulf %3, %4 : vector<8x1xf32>
    %c0_4 = arith.constant 0 : index
    %c0_5 = arith.constant 0 : index
    %6 = vector.load %arg1[%c0_4, %c0_5] : memref<8x64xf32, #tpu.memory_space<vmem>>, vector<8x64xf32>
    %7 = vector.broadcast %5 : vector<8x1xf32> to vector<8x64xf32>
    %8 = arith.subf %6, %7 : vector<8x64xf32>
    %9 = arith.mulf %8, %8 : vector<8x64xf32>
    %cst_6 = arith.constant dense<0.000000e+00> : vector<8xf32>
    %10 = vector.multi_reduction <add>, %9, %cst_6 [1] : vector<8x64xf32> to vector<8xf32>
    %11 = vector.shape_cast %10 : vector<8xf32> to vector<8x1xf32>
    %cst_7 = arith.constant 0.0158730168 : f32
    %12 = vector.broadcast %cst_7 : f32 to vector<8x1xf32>
    %13 = arith.mulf %11, %12 : vector<8x1xf32>
    %14 = vector.broadcast %0 : f32 to vector<8x1xf32>
    %15 = arith.addf %13, %14 : vector<8x1xf32>
    %16 = math.rsqrt %15 : vector<8x1xf32>
    %c0_8 = arith.constant 0 : index
    %c0_9 = arith.constant 0 : index
    %17 = vector.load %arg2[%c0_8, %c0_9] : memref<1x64xf32, #tpu.memory_space<vmem>>, vector<1x64xf32>
    %18 = vector.broadcast %17 : vector<1x64xf32> to vector<8x64xf32>
    %19 = vector.broadcast %16 : vector<8x1xf32> to vector<8x64xf32>
    %20 = arith.addf %18, %19 : vector<8x64xf32>
    %21 = arith.mulf %8, %20 : vector<8x64xf32>
    %22 = vector.broadcast %17 : vector<1x64xf32> to vector<8x64xf32>
    %23 = vector.broadcast %5 : vector<8x1xf32> to vector<8x64xf32>
    %24 = arith.mulf %22, %23 : vector<8x64xf32>
    %25 = arith.addf %21, %24 : vector<8x64xf32>
    %c0_10 = arith.constant 0 : index
    %c0_11 = arith.constant 0 : index
    %26 = vector.load %arg4[%c0_10, %c0_11] : memref<8x64xf32, #tpu.memory_space<vmem>>, vector<8x64xf32>
    tpu.vector_store %arg4[%c0_10, %c0_11], %25 {strides = array<i32>} : memref<8x64xf32, #tpu.memory_space<vmem>>, vector<8x64xf32>,
    return
  }
  func.func @transform_0(%arg0: i32) -> (i32, i32) {
    %c0_i32 = arith.constant 0 : i32
    %c0_i32_0 = arith.constant 0 : i32
    return %arg0, %c0_i32 : i32, i32
  }
  func.func @transform_1(%arg0: i32) -> (i32, i32) {
    %c0_i32 = arith.constant 0 : i32
    %c0_i32_0 = arith.constant 0 : i32
    %c0_i32_1 = arith.constant 0 : i32
    return %c0_i32, %c0_i32_0 : i32, i32
  }
  func.func @transform_2(%arg0: i32) -> (i32, i32) {
    %c0_i32 = arith.constant 0 : i32
    %c0_i32_0 = arith.constant 0 : i32
    %c0_i32_1 = arith.constant 0 : i32
    return %c0_i32, %c0_i32_0 : i32, i32
  }
  func.func @transform_3(%arg0: i32) -> (i32, i32) {
    %c0_i32 = arith.constant 0 : i32
    %c0_i32_0 = arith.constant 0 : i32
    return %arg0, %c0_i32 : i32, i32
  }
}

</mosaic_0001>

<llo_original>
// kernel: tpu_custom_call.1
$region0: #{tpu_custom_call.1}
  #allocation0 [shape = 'u32[]', space=smem, size = 0x4, offset = 0x4, fixed_abs, tag = 'smem constant byte address 0x4 - core index']
  #allocation1 [shape = 'u32[72,128]{1,0:T(1,128)}', space=vmem, size = 0x9000, scoped, tag = 'internal scratch']
  #allocation2 [shape = 'f32[1,1]{1,0:T(1,128)S(6)}', space=smem, size = 0x200, scoped, tag = 'scoped memory for tpu_custom_call.1']
  %s0 = inlined_call_operand.hbm [shape: f32[32,64], index: 0, kind: input, shape index: {}]
  %s1 = inlined_call_operand.vmem [shape: f32[1,64], index: 1, kind: input, shape index: {}]
  %s2 = inlined_call_operand.<no memory space> [shape: f32[1,1], index: 2, kind: input, shape index: {}]
  %s3 = inlined_call_operand.hbm [shape: f32[32,64], index: 3, kind: output, shape index: {}]
  %s4 = sld [smem:[#allocation0]]
  $region49: #{tpu_custom_call.1} parent=0
    _
  %s6 = ssub.s32 1, %s4
  %s7 = scalar_select 0, %s6, %s4
  %8 = sst [smem:[#allocation2]] %s2
  $region1: #{tpu_custom_call.1} parent=0
    #allocation3 [shape = 'u8[8192]{0}', space=vmem, size = 0x2000, scoped, tag = 'input window, operand 0']
    #allocation4 [shape = 's32[2]{0}', space=sflag, size = 0x8, scoped, tag = 'scoped memory for tpu_custom_call.1']
    #allocation5 [shape = 's32[2]{0}', space=sflag, size = 0x8, scoped, tag = 'scoped memory for tpu_custom_call.1']
    #allocation6 [shape = 'u8[8192]{0}', space=vmem, size = 0x2000, scoped, tag = 'output window, operand 0']
    %9 = vsyncpa [#allocation4], 0
    %s10 = scalar_lea.sflag [#allocation4], 1
    %11 = vsyncpa %s10, 0
    %12 = vsyncpa [#allocation5], 0
    %s13 = scalar_lea.sflag [#allocation5], 1
    %14 = vsyncpa %s13, 0
    loop: start=0, step=1, limit=6
    $region2: #{tpu_custom_call.1} parent=1 // loop_pre_header
      _
    $region3: #{tpu_custom_call.1} parent=1 // loop_header
      %s16 = sphi 0, %s20
      %p17 = scmp.ge.s32.totalorder %s16, 6
      %s26 = sphi 0, %s28
      %s29 = sphi 0, %s26
      %s30 = sphi 0, %s29
      %s46 = sphi 0, %s30
      %s50 = sphi 0, %s50
      %s52 = sphi 0, %s50
      %s53 = sphi 0, %s52
      %s67 = sphi 0, %s53
      %s71 = sphi 0, %s71
      %s73 = sphi 0, %s71
      %s74 = sphi 0, %s73
      %s88 = sphi 0, %s74
      %s94 = sphi 0, %s96
      %s97 = sphi 0, %s94
      %s98 = sphi 0, %s97
      %s114 = sphi 0, %s98
    $region4: #{tpu_custom_call.1} parent=1 // loop_header_branch
      %19 = sbr.rel (%p17) target = $region8
    $region5: #{tpu_custom_call.1} parent=1 // loop_body
      %s21 = ssub.s32 %s16, 1
      %s22 = ssub.s32 %s16, 2
      %s23 = sadd.s32 %s16, 1
      %s24 = ssub.s32 %s16, %s23
      %p25 = scmp.eq.s32.totalorder %s24, 0
      %s27 = sadd.s32 %s26, 1
      %s28 = scalar_select %p25, %s26, %s27
      %p31 = pneg %p25
      %p32 = scmp.eq.s32.totalorder %s16, 3
      %p33 = por %p31, %p32
      %p34 = scmp.ne.s32.totalorder %s26, %s29
      %p35 = scmp.eq.s32.totalorder %s16, 0
      %p36 = por %p34, %p35
      %p37 = scmp.ne.s32.totalorder %s26, %s29
      %p38 = scmp.eq.s32.totalorder %s21, 3
      %p39 = por %p37, %p38
      %p40 = scmp.ne.s32.totalorder %s29, %s30
      %p41 = scmp.eq.s32.totalorder %s21, 0
      %p42 = por %p40, %p41
      %p43 = scmp.ne.s32.totalorder %s29, %s30
      %p44 = scmp.eq.s32.totalorder %s22, 3
      %p45 = por %p43, %p44
      %p47 = scmp.ne.s32.totalorder %s30, %s46
      %p48 = scmp.eq.s32.totalorder %s22, 0
      %p49 = por %p47, %p48
      %s51 = sadd.s32 %s50, 1
      %p54 = scmp.eq.s32.totalorder %s16, 3
      %p55 = scmp.ne.s32.totalorder %s50, %s52
      %p56 = scmp.eq.s32.totalorder %s16, 0
      %p57 = por %p55, %p56
      %p58 = scmp.ne.s32.totalorder %s50, %s52
      %p59 = scmp.eq.s32.totalorder %s21, 3
      %p60 = por %p58, %p59
      %p61 = scmp.ne.s32.totalorder %s52, %s53
      %p62 = scmp.eq.s32.totalorder %s21, 0
      %p63 = por %p61, %p62
      %p64 = scmp.ne.s32.totalorder %s52, %s53
      %p65 = scmp.eq.s32.totalorder %s22, 3
      %p66 = por %p64, %p65
      %p68 = scmp.ne.s32.totalorder %s53, %s67
      %p69 = scmp.eq.s32.totalorder %s22, 0
      %p70 = por %p68, %p69
      %s72 = sadd.s32 %s71, 1
      %p75 = scmp.eq.s32.totalorder %s16, 3
      %p76 = scmp.ne.s32.totalorder %s71, %s73
      %p77 = scmp.eq.s32.totalorder %s16, 0
      %p78 = por %p76, %p77
      %p79 = scmp.ne.s32.totalorder %s71, %s73
      %p80 = scmp.eq.s32.totalorder %s21, 3
      %p81 = por %p79, %p80
      %p82 = scmp.ne.s32.totalorder %s73, %s74
      %p83 = scmp.eq.s32.totalorder %s21, 0
      %p84 = por %p82, %p83
      %p85 = scmp.ne.s32.totalorder %s73, %s74
      %p86 = scmp.eq.s32.totalorder %s22, 3
      %p87 = por %p85, %p86
      %p89 = scmp.ne.s32.totalorder %s74, %s88
      %p90 = scmp.eq.s32.totalorder %s22, 0
      %p91 = por %p89, %p90
      %s92 = ssub.s32 %s16, %s23
      %p93 = scmp.eq.s32.totalorder %s92, 0
      %s95 = sadd.s32 %s94, 1
      %s96 = scalar_select %p93, %s94, %s95
      %p99 = pneg %p93
      %p100 = scmp.eq.s32.totalorder %s16, 3
      %p101 = por %p99, %p100
      %p102 = scmp.ne.s32.totalorder %s94, %s97
      %p103 = scmp.eq.s32.totalorder %s16, 0
      %p104 = por %p102, %p103
      %p105 = scmp.ne.s32.totalorder %s94, %s97
      %p106 = scmp.eq.s32.totalorder %s21, 3
      %p107 = por %p105, %p106
      %p108 = scmp.ne.s32.totalorder %s97, %s98
      %p109 = scmp.eq.s32.totalorder %s21, 0
      %p110 = por %p108, %p109
      %p111 = scmp.ne.s32.totalorder %s97, %s98
      %p112 = scmp.eq.s32.totalorder %s22, 3
      %p113 = por %p111, %p112
      %p115 = scmp.ne.s32.totalorder %s98, %s114
      %p116 = scmp.eq.s32.totalorder %s22, 0
      %p117 = por %p115, %p116
      %p118 = scmp.le.s32.totalorder 1, %s16
      %p119 = scmp.lt.s32.totalorder %s16, 5
      %p120 = pnand %p118, %p119
      %p121 = pneg %p120
      // Predicated region
      $region9: #{tpu_custom_call.1} parent=5 // pred_check
        _
      $region10: #{tpu_custom_call.1} parent=5 // pred_check_branch
        %123 = sbr.rel (%p120) target = $region12
      $region11: #{tpu_custom_call.1} parent=5 // pred_region
        %s124 = ssub.s32 %s16, 1
        // Predicated region
        $region13: #{tpu_custom_call.1} parent=11 // pred_check
          %p125 = pneg %p63
        $region14: #{tpu_custom_call.1} parent=11 // pred_check_branch
          %127 = sbr.rel (%p125) target = $region16
        $region15: #{tpu_custom_call.1} parent=11 // pred_region
          _
        $region16: #{tpu_custom_call.1} parent=11 // pred_fallthru
          _
        // Predicated region
        $region17: #{tpu_custom_call.1} parent=11 // pred_check
          %p128 = pneg %p84
        $region18: #{tpu_custom_call.1} parent=11 // pred_check_branch
          %130 = sbr.rel (%p128) target = $region20
        $region19: #{tpu_custom_call.1} parent=11 // pred_region
          _
        $region20: #{tpu_custom_call.1} parent=11 // pred_fallthru
          _
      $region12: #{tpu_custom_call.1} parent=5 // pred_fallthru
        _
      %p131 = scmp.lt.s32.totalorder %s16, 4
      // Predicated region
      $region21: #{tpu_custom_call.1} parent=5 // pred_check
        %p132 = pneg %p131
      $region22: #{tpu_custom_call.1} parent=5 // pred_check_branch
        %134 = sbr.rel (%p132) target = $region24
      $region23: #{tpu_custom_call.1} parent=5 // pred_region
        // Predicated region
        $region25: #{tpu_custom_call.1} parent=23 // pred_check
          %p135 = pneg %p36
        $region26: #{tpu_custom_call.1} parent=23 // pred_check_branch
          %137 = sbr.rel (%p135) target = $region28
        $region27: #{tpu_custom_call.1} parent=23 // pred_region
          %s138 = sand.u32 %s26, 1
          %s139 = scalar_lea.sflag [#allocation4], %s138
          %s140 = sand.u32 %s26, 1
          %s141 = smul.addr %s140, 8
          %s142 = scalar_lea.vmem [#allocation3], %s141
          %144 = vsyncadd %s139, 0
          %s145 = smul.addr %s16, 8
          %s146 = scalar_lea.hbm %s0, %s145
          %s148 = sshll.u32 %s146, 4
          %s149 = int_to_ptr.hbm [resolvable:$true] %s148
          %s150 = sshll.u32 %s142, 4
          %s151 = int_to_ptr.vmem [resolvable:$true] %s150
          %153 = dma.hbm_to_vmem [thread:$0]  %s149, 128, %s151, %s139
        $region28: #{tpu_custom_call.1} parent=23 // pred_fallthru
          _
      $region24: #{tpu_custom_call.1} parent=5 // pred_fallthru
        _
      %p154 = scmp.le.s32.totalorder 1, %s16
      %p155 = scmp.lt.s32.totalorder %s16, 5
      %p156 = pnand %p154, %p155
      %p157 = pneg %p156
      // Predicated region
      $region29: #{tpu_custom_call.1} parent=5 // pred_check
        _
      $region30: #{tpu_custom_call.1} parent=5 // pred_check_branch
        %159 = sbr.rel (%p156) target = $region32
      $region31: #{tpu_custom_call.1} parent=5 // pred_region
        %s160 = ssub.s32 %s16, 1
        %s161 = sand.u32 %s29, 1
        %s162 = scalar_lea.sflag [#allocation4], %s161
        %s163 = sand.u32 %s29, 1
        %s164 = smul.addr %s163, 8
        %s165 = scalar_lea.vmem [#allocation3], %s164
        // Predicated region
        $region33: #{tpu_custom_call.1} parent=31 // pred_check
          %p166 = pneg %p42
        $region34: #{tpu_custom_call.1} parent=31 // pred_check_branch
          %168 = sbr.rel (%p166) target = $region36
        $region35: #{tpu_custom_call.1} parent=31 // pred_region
          %170 = dma.done %s162, 128
        $region36: #{tpu_custom_call.1} parent=31 // pred_fallthru
          _
        %s171 = sand.u32 %s29, 1
        %s172 = scalar_lea.sflag [#allocation4], %s171
        %s173 = sand.u32 %s29, 1
        %s174 = smul.addr %s173, 8
        %s175 = scalar_lea.vmem [#allocation3], %s174
        %p176 = pneg %p42
        %p177 = pneg %p39
        %p178 = pneg %p63
        %p179 = pneg %p60
        %p180 = pneg %p84
        %p181 = pneg %p81
        %p182 = pneg %p110
        %p183 = pneg %p107
        %s184 = sand.u32 %s97, 1
        %s185 = scalar_lea.sflag [#allocation5], %s184
        %s186 = sand.u32 %s97, 1
        %s187 = smul.addr %s186, 8
        %s188 = scalar_lea.vmem [#allocation6], %s187
        %s189 = sld [smem:[#allocation2]]
        %v190 = vld [vmem:[%s165] sm:$0xff]
        %vm191 = vcmask 523264
        %v192 = vsel %vm191, %v190, 0.0
        %193 = vadd.xlane.f32.xlu0 %v192
        %v194 = vpop.xlane.xlu0 %193
        %v195 = vmul.f32 %v194, 0.015625
        %v196 = vsub.f32 %v190, %v195
        %v197 = vmul.f32 %v196, %v196
        %v198 = vsel %vm191, %v197, 0.0
        %199 = vadd.xlane.f32.xlu0 %v198
        %v200 = vpop.xlane.xlu0 %199
        %v201 = vmul.f32 %v200, 0.015873017
        %v202 = vstv %s189
        %v203 = vadd.f32 %v201, %v202
        %v204 = vrsqrt.pop %v203
        %v205 = vmul.f32 %v204, %v203
        %v206 = vmul.f32 %v205, %v204
        %v207 = vmul.f32 0.5, %v206
        %v208 = vsub.f32 1.5, %v207
        %v209 = vmul.f32 %v204, %v208
        %vm210 = vweird.f32 %v203
        %vm211 = vweird.f32 %v204
        %vm212 = vmor %vm210, %vm211
        %v213 = vsel %vm212, %v204, %v209
        %v214 = vld [vmem:[%s1] sm:$0x1]
        %v216 = vperm.slane %v214, 0
        %v218 = vadd.f32 %v216, %v213
        %v219 = vmul.f32 %v196, %v218
        %v220 = vmul.f32 %v216, %v195
        %v221 = vadd.f32 %v219, %v220
        %222 = vst.msk [vmem:[%s188] sm:$0xff] %vm191, %v221
        %s223 = sand.u32 %s97, 1
        %s224 = scalar_lea.sflag [#allocation5], %s223
        %s225 = sand.u32 %s97, 1
        %s226 = smul.addr %s225, 8
        %s227 = scalar_lea.vmem [#allocation6], %s226
        // Predicated region
        $region37: #{tpu_custom_call.1} parent=31 // pred_check
          %p228 = pneg %p107
        $region38: #{tpu_custom_call.1} parent=31 // pred_check_branch
          %230 = sbr.rel (%p228) target = $region40
        $region39: #{tpu_custom_call.1} parent=31 // pred_region
          %232 = vsyncadd %s224, 0
          %s233 = smul.addr %s21, 8
          %s234 = scalar_lea.hbm %s3, %s233
          %s236 = sshll.u32 %s227, 4
          %s237 = int_to_ptr.vmem [resolvable:$true] %s236
          %s238 = sshll.u32 %s234, 4
          %s239 = int_to_ptr.hbm [resolvable:$true] %s238
          %241 = dma.vmem_to_hbm [thread:$0]  %s237, 128, %s239, %s224
        $region40: #{tpu_custom_call.1} parent=31 // pred_fallthru
          _
      $region32: #{tpu_custom_call.1} parent=5 // pred_fallthru
        _
      %p242 = scmp.le.s32.totalorder 2, %s16
      // Predicated region
      $region41: #{tpu_custom_call.1} parent=5 // pred_check
        %p243 = pneg %p242
      $region42: #{tpu_custom_call.1} parent=5 // pred_check_branch
        %245 = sbr.rel (%p243) target = $region44
      $region43: #{tpu_custom_call.1} parent=5 // pred_region
        %s246 = ssub.s32 %s16, 2
        // Predicated region
        $region45: #{tpu_custom_call.1} parent=43 // pred_check
          %p247 = pneg %p113
        $region46: #{tpu_custom_call.1} parent=43 // pred_check_branch
          %249 = sbr.rel (%p247) target = $region48
        $region47: #{tpu_custom_call.1} parent=43 // pred_region
          %s250 = sand.u32 %s98, 1
          %s251 = scalar_lea.sflag [#allocation5], %s250
          %s252 = sand.u32 %s98, 1
          %s253 = smul.addr %s252, 8
          %s254 = scalar_lea.vmem [#allocation6], %s253
          %256 = dma.done %s251, 128
        $region48: #{tpu_custom_call.1} parent=43 // pred_fallthru
          _
      $region44: #{tpu_custom_call.1} parent=5 // pred_fallthru
        _
    $region6: #{tpu_custom_call.1} parent=1 // loop_footer
      %s20 = sadd.s32 1, %s16
    $region7: #{tpu_custom_call.1} parent=1 // loop_footer_branch
      %15 = sbr.rel target = $region3
    $region8: #{tpu_custom_call.1} parent=1 // loop_exit
      _
    %257 = vsyncpa [#allocation4], 1
    %s258 = scalar_lea.sflag [#allocation4], 1
    %259 = vsyncpa %s258, 1
    %260 = vsyncpa [#allocation5], 1
    %s261 = scalar_lea.sflag [#allocation5], 1
    %262 = vsyncpa %s261, 1

</llo_original>
